<compile_context>
chip_gen: v6e
topology: v6e:2x2x1
jax: 0.10.0
libtpu: 0.0.40
codegen_flags: <defaults>
</compile_context>

<pallas_src>
import functools

import jax
import jax.numpy as jnp
from jax import lax
from jax.experimental import pallas as pl
from jax.experimental.pallas import tpu as pltpu

_BN_EPS = 1e-5
_LANE = 128
_SUBLANE = 8


def _round_up(x, m):
    return (x + m - 1) // m * m


def _vmem_capacity_bytes():
    # Per-TensorCore VMEM capacity (v5e/v6e: 128 MiB, v7x: 64 MiB). Fall back
    # to the smallest (v7x) figure if the query is unavailable.
    try:
        return int(pltpu.get_tpu_info().vmem_capacity_bytes)
    except Exception:
        return 64 * 1024 * 1024


def _pick_batch_tile(n, conv_len, per_sample_bytes, tile_budget_bytes,
                     min_steps=8):
    """Largest batch tile that (a) divides n, (b) keeps the double-buffered
    per-step working set within `tile_budget_bytes`, and (c) leaves at least
    `min_steps` grid steps when n allows (pipeline overlap + both v7x TCs)."""
    budget_bt = max(1, int(tile_budget_bytes // max(per_sample_bytes, 1)))
    step_bt = max(1, n // min_steps)
    cap = max(1, min(n, budget_bt, step_bt))
    divisors = [d for d in range(1, cap + 1) if n % d == 0]
    # Prefer tiles that keep the matmul M dim (bt * conv_len) sublane-aligned.
    aligned = [d for d in divisors if (d * conv_len) % _SUBLANE == 0]
    return (aligned or divisors)[-1]


# ----------------------------------------------------------------------------
# Pallas kernel: one fused inception layer (all branches) for one batch tile
# ----------------------------------------------------------------------------
def inception_layer_kernel(xpad_ref, w_ref, shift_ref, out_ref, *,
                           branch_meta, conv_len, pool, max_pad):
    # xpad_ref : (bt, L_pad, C_in)   shared max-padded input, channels-last (bf16)
    # w_ref    : (D_pad, C_pad)      packed im2col weights, BN scale folded in;
    #                                rows ordered (branch, tap, c_in); columns
    #                                are the lane-padded concatenated C_out
    # shift_ref: (1, C_pad)          folded BN shift (fp32)
    # out_ref  : (bt, L_out, C_pad)  L_out = conv_len // pool
    bt, _, c_in = xpad_ref.shape
    c_pad = out_ref.shape[-1]
    m = bt * conv_len

    x = xpad_ref[...]                                    # (bt, L_pad, C_in)

    # Per-(branch, tap) MXU accumulation in fp32. Each tap is a small
    # (M, C_in) @ (C_in, C_pad) matmul; the MXU has slack at these shapes and
    # this avoids materializing the (M, sum_b K_b*C_in) im2col slab and the
    # XLU lane-packing that concatenating sub-128-wide chunks would cause.
    acc = jnp.zeros((m, c_pad), jnp.float32)
    r_off = 0
    for (ksize, dilation, padding) in branch_meta:       # static Python loops
        off0 = max_pad - padding      # branch window start in max-padded buffer
        for k in range(ksize):
            start = off0 + k * dilation
            lhs = x[:, start:start + conv_len, :].reshape(m, c_in)
            w_tap = w_ref[r_off + k * c_in:r_off + (k + 1) * c_in, :]
            acc = acc + jnp.dot(lhs, w_tap,
                                preferred_element_type=jnp.float32)
        r_off += ksize * c_in

    # BN (eval; scale already folded into weight columns) + ReLU.
    # Keep the epilogue in fp32; cast only at the final store.
    y = jnp.maximum(acc + shift_ref[...], 0.0)           # (m, C_pad)

    # max_pool1d(kernel_size=pool, stride=pool) with torch-style floor
    # truncation, expressed as an elementwise max over `pool` shifted views
    # (VPU) instead of a reduce over a middle sublane-split axis.
    l_out = conv_len // pool
    y = y.reshape(bt, conv_len, c_pad)
    if conv_len != l_out * pool:
        y = y[:, :l_out * pool, :]
    z = y.reshape(bt, l_out, pool, c_pad)
    pooled = z[:, :, 0, :]
    for p in range(1, pool):
        pooled = jnp.maximum(pooled, z[:, :, p, :])
    out_ref[...] = pooled.astype(out_ref.dtype)


# ----------------------------------------------------------------------------
# Per-layer wrapper: one pallas_call per layer (all branches fused)
# ----------------------------------------------------------------------------
def inception_layer_forward(x_nlc, w_big, shift, *, branch_meta, pool,
                            matmul_dtype=jnp.bfloat16, batch_tile=None):
    n, seq_len, c_in = x_nlc.shape
    d_pad, c_pad = w_big.shape
    max_pad = max(p for (_k, _d, p) in branch_meta)

    # torch.cat along channels requires every branch to produce the same length.
    conv_lens = {seq_len + 2 * p - d * (k - 1) for (k, d, p) in branch_meta}
    assert len(conv_lens) == 1, conv_lens
    conv_len = conv_lens.pop()
    l_out = conv_len // pool
    l_pad = seq_len + 2 * max_pad

    # Pad once per layer (shared by all branches) and cast to the MXU dtype in
    # the wrapper so the input DMA moves bf16 bytes.
    xpad = jnp.pad(x_nlc, ((0, 0), (max_pad, max_pad), (0, 0)))
    xpad = xpad.astype(matmul_dtype)

    in_itemsize = jnp.dtype(matmul_dtype).itemsize
    # Double-buffered per-sample working set: 2x input block + 2x output block
    # + fp32 accumulator / epilogue intermediates.
    per_sample = (2 * l_pad * c_in * in_itemsize
                  + 2 * l_out * c_pad * 4
                  + 3 * conv_len * c_pad * 4)
    weight_bytes = 2 * (w_big.size * in_itemsize + c_pad * 4)

    vmem_cap = _vmem_capacity_bytes()
    tile_budget = vmem_cap // 4 - weight_bytes      # per-generation headroom

    if batch_tile is None:
        bt = _pick_batch_tile(n, conv_len, per_sample,
                              max(tile_budget, per_sample))
    else:
        bt = batch_tile
    assert n % bt == 0, (n, bt)

    est_bytes = bt * per_sample + weight_bytes
    vmem_limit = int(min(max(4 * est_bytes, 32 * 1024 * 1024),
                         vmem_cap * 3 // 4))

    kern = functools.partial(inception_layer_kernel,
                             branch_meta=tuple(branch_meta),
                             conv_len=conv_len, pool=pool, max_pad=max_pad)

    flops = 2 * n * conv_len * d_pad * c_pad
    bytes_accessed = (xpad.size * in_itemsize + w_big.size * in_itemsize
                      + c_pad * 4 + n * l_out * c_pad * 4)

    return pl.pallas_call(
        kern,
        out_shape=jax.ShapeDtypeStruct((n, l_out, c_pad), jnp.float32),
        grid=(n // bt,),
        in_specs=[
            pl.BlockSpec((bt, l_pad, c_in), lambda b: (b, 0, 0)),
            pl.BlockSpec((d_pad, c_pad), lambda b: (0, 0)),
            pl.BlockSpec((1, c_pad), lambda b: (0, 0)),
        ],
        out_specs=pl.BlockSpec((bt, l_out, c_pad), lambda b: (b, 0, 0)),
        compiler_params=pltpu.CompilerParams(
            dimension_semantics=("parallel",),
            vmem_limit_bytes=vmem_limit),
        cost_estimate=pl.CostEstimate(flops=flops, transcendentals=0,
                                      bytes_accessed=bytes_accessed),
    )(xpad, w_big, shift)


# ----------------------------------------------------------------------------
# Parameter packing (done ONCE, outside the per-call forward path)
# ----------------------------------------------------------------------------
def fold_layer_params(branch_params, branch_meta, c_in, c_pad,
                      matmul_dtype=jnp.bfloat16):
    """Fold conv weights/bias + eval-mode BN stats of one layer into a
    lane-padded block-diagonal im2col weight (BN scale folded into its
    columns) and a per-channel shift."""
    row_sizes = [ks * c_in for (ks, _d, _p) in branch_meta]
    col_sizes = [p["w"].shape[0] for p in branch_params]
    d_total = sum(row_sizes)
    d_pad = _round_up(d_total, _SUBLANE)       # contraction-dim alignment

    w_big = jnp.zeros((d_pad, c_pad), jnp.float32)
    shift = jnp.zeros((c_pad,), jnp.float32)
    r_off = c_off = 0
    for p, rs, cs in zip(branch_params, row_sizes, col_sizes):
        scale = p["gamma"] / jnp.sqrt(p["var"] + _BN_EPS)
        # torch Conv1d weight (C_out, C_in, K) -> im2col rows ordered (k, c_in),
        # BN scale folded into the output columns.
        w_kio = jnp.transpose(p["w"], (2, 1, 0)).reshape(rs, cs) * scale[None, :]
        w_big = w_big.at[r_off:r_off + rs, c_off:c_off + cs].set(w_kio)
        shift = shift.at[c_off:c_off + cs].set(
            p["beta"] + (p["b"] - p["mean"]) * scale)
        r_off += rs
        c_off += cs
    return w_big.astype(matmul_dtype), shift.reshape(1, c_pad)


def pack_inception_params(layers_params, layers_cfg, c_in0,
                          matmul_dtype=jnp.bfloat16):
    """Precompute packed per-layer kernel parameters once per parameter set."""
    packed = []
    c_in = c_in0
    for cfg, params in zip(layers_cfg, layers_params):
        c_total = sum(p["w"].shape[0] for p in params)
        c_pad = _round_up(c_total, _LANE)      # lane-dense matmul N / store
        w_big, shift = fold_layer_params(params, cfg["branches"], c_in, c_pad,
                                         matmul_dtype)
        packed.append(dict(w=w_big, shift=shift,
                           branches=tuple(cfg["branches"]),
                           pool=cfg["pool"], c_total=c_total))
        c_in = c_total
    return packed


# ----------------------------------------------------------------------------
# Model glue (layer loop, flatten) — plain JAX
# ----------------------------------------------------------------------------
def inception_forward(x_ncl, labels, packed_layers,
                      matmul_dtype=jnp.bfloat16):
    # PyTorch input is NCL; kernels run channels-last (N, L, C). Transpose once.
    x = jnp.transpose(x_ncl, (0, 2, 1))
    for layer in packed_layers:
        y = inception_layer_forward(
            x, layer["w"], layer["shift"], branch_meta=layer["branches"],
            pool=layer["pool"], matmul_dtype=matmul_dtype)
        x = y[:, :, :layer["c_total"]]         # strip lane padding (zeros)
    # torch.flatten(x, start_dim=1) on NCL layout:
    x_ncl_out = jnp.transpose(x, (0, 2, 1))
    flat = x_ncl_out.reshape(x_ncl_out.shape[0], -1).astype(x_ncl.dtype)
    return flat, labels


def reference_forward(x_ncl, labels, layers_params, layers_cfg):
    """Pure-JAX fp32 reference (NCL layout, mirrors the PyTorch forward)."""
    x = x_ncl
    for cfg, params in zip(layers_cfg, layers_params):
        pool = cfg["pool"]
        outs = []
        for (ks, dil, pad), p in zip(cfg["branches"], params):
            y = lax.conv_general_dilated(
                x, p["w"], window_strides=(1,), padding=[(pad, pad)],
                rhs_dilation=(dil,), dimension_numbers=("NCH", "OIH", "NCH"))
            y = y + p["b"][None, :, None]
            y = (p["gamma"][None, :, None] * (y - p["mean"][None, :, None])
                 / jnp.sqrt(p["var"][None, :, None] + _BN_EPS)
                 + p["beta"][None, :, None])
            y = jnp.maximum(y, 0.0)
            outs.append(y)
        x = jnp.concatenate(outs, axis=1)
        n, c, l = x.shape
        lo = l // pool
        x = x[:, :, :lo * pool].reshape(n, c, lo, pool).max(axis=-1)
    return x.reshape(x.shape[0], -1), labels


def init_branch_params(key, c_in, c_out, ksize):
    kw, kb, kg, kbe, km, kv = jax.random.split(key, 6)
    return dict(
        w=0.1 * jax.random.normal(kw, (c_out, c_in, ksize), jnp.float32),
        b=0.1 * jax.random.normal(kb, (c_out,), jnp.float32),
        gamma=1.0 + 0.1 * jax.random.normal(kg, (c_out,), jnp.float32),
        beta=0.1 * jax.random.normal(kbe, (c_out,), jnp.float32),
        mean=0.1 * jax.random.normal(km, (c_out,), jnp.float32),
        var=1.0 + jnp.abs(jax.random.normal(kv, (c_out,), jnp.float32)),
    )


if __name__ == "__main__":
    key = jax.random.PRNGKey(0)
    kx, kl, kp = jax.random.split(key, 3)

    # Small synthetic shapes consistent with the module (dim=1, NCL input).
    N, C_IN, L = 2, 4, 16
    x = jax.random.normal(kx, (N, C_IN, L), jnp.float32)
    labels = jax.random.randint(kl, (N,), 0, 3)

    # Config mirroring inception.__init__ (dim=1):
    #  block 0: in=4, out=8, branches (ks,dil,pad) = (3,1,1),(3,2,2); max_pool_ks = 2
    #  block 1 (last): in=8, out=8, branches (3,1,1),(5,1,2);
    #                  max_pool_ks = 2 * len(branches) = 4
    layers_cfg = [
        dict(in_channels=4, out_channels=8, branches=[(3, 1, 1), (3, 2, 2)], pool=2),
        dict(in_channels=8, out_channels=8, branches=[(3, 1, 1), (5, 1, 2)], pool=2 * 2),
    ]

    layers_params = []
    layer_keys = jax.random.split(kp, len(layers_cfg))
    for cfg, lk in zip(layers_cfg, layer_keys):
        c_out_branch = cfg["out_channels"] // len(cfg["branches"])
        branch_keys = jax.random.split(lk, len(cfg["branches"]))
        layers_params.append([
            init_branch_params(bk, cfg["in_channels"], c_out_branch, ks)
            for bk, (ks, _d, _p) in zip(branch_keys, cfg["branches"])
        ])

    # Pack weights / fold BN ONCE (hoisted out of the forward path).
    packed_layers = pack_inception_params(layers_params, layers_cfg, c_in0=C_IN)

    out, out_labels = inception_forward(x, labels, packed_layers)
    out = jax.block_until_ready(out)

    ref, _ = reference_forward(x, labels, layers_params, layers_cfg)
    assert out.shape == ref.shape, (out.shape, ref.shape)
    # bf16 MXU operands vs fp32 reference -> bf16-appropriate tolerance.
    assert jnp.allclose(out, ref, atol=2e-2, rtol=2e-2), "mismatch vs JAX reference"

    print("KERNEL_OK")
</pallas_src>

<mosaic_0001>
module attributes {stable_mosaic.version = 11 : i64} {
  func.func @inception_layer_kernel(%arg0: i32, %arg1: memref<1x20x4xbf16, #tpu.memory_space<vmem>>, %arg2: memref<24x128xbf16, #tpu.memory_space<vmem>>, %arg3: memref<1x128xf32, #tpu.memory_space<vmem>>, %arg4: memref<1x8x128xf32, #tpu.memory_space<vmem>>) attributes {dimension_semantics = [#tpu.dimension_semantics<parallel>], iteration_bounds = array<i64: 2>, scalar_prefetch = 0 : i64, scratch_operands = 0 : i64, tpu.core_type = #tpu.core_type<tc>, window_params = [{transform_indices = @transform_0, window_bounds = array<i64: 1, 20, 4>}, {pipeline_mode = #tpu.pipeline_mode<synchronous>, transform_indices = @transform_1, window_bounds = array<i64: 24, 128>}, {pipeline_mode = #tpu.pipeline_mode<synchronous>, transform_indices = @transform_2, window_bounds = array<i64: 1, 128>}, {transform_indices = @transform_3, window_bounds = array<i64: 1, 8, 128>}]} {
    %c0 = arith.constant 0 : index
    %c0_0 = arith.constant 0 : index
    %c0_1 = arith.constant 0 : index
    %0 = vector.load %arg1[%c0, %c0_0, %c0_1] : memref<1x20x4xbf16, #tpu.memory_space<vmem>>, vector<1x20x4xbf16>
    %cst = arith.constant 0.000000e+00 : f32
    %1 = vector.broadcast %cst : f32 to vector<16x128xf32>
    %2 = vector.extract_strided_slice %0 {offsets = [0, 1, 0], sizes = [1, 16, 4], strides = [1, 1, 1]} : vector<1x20x4xbf16> to vector<1x16x4xbf16>
    %3 = vector.shape_cast %2 : vector<1x16x4xbf16> to vector<16x4xbf16>
    %c0_2 = arith.constant 0 : index
    %c0_3 = arith.constant 0 : index
    %4 = vector.load %arg2[%c0_2, %c0_3] : memref<24x128xbf16, #tpu.memory_space<vmem>>, vector<4x128xbf16>
    %cst_4 = arith.constant dense<0.000000e+00> : vector<16x128xf32>
    %5 = tpu.matmul %3, %4, %cst_4 {dimension_numbers = #tpu.dot_dimension_numbers<[1], [0], [0], [1], [0, 0, 1, 1], [], []>} : vector<16x4xbf16>, vector<4x128xbf16>, vector<16x128xf32> -> vector<16x128xf32>
    %6 = arith.addf %1, %5 : vector<16x128xf32>
    %7 = vector.extract_strided_slice %0 {offsets = [0, 2, 0], sizes = [1, 16, 4], strides = [1, 1, 1]} : vector<1x20x4xbf16> to vector<1x16x4xbf16>
    %8 = vector.shape_cast %7 : vector<1x16x4xbf16> to vector<16x4xbf16>
    %c4 = arith.constant 4 : index
    %c0_5 = arith.constant 0 : index
    %9 = vector.load %arg2[%c4, %c0_5] : memref<24x128xbf16, #tpu.memory_space<vmem>>, vector<4x128xbf16>
    %cst_6 = arith.constant dense<0.000000e+00> : vector<16x128xf32>
    %10 = tpu.matmul %8, %9, %cst_6 {dimension_numbers = #tpu.dot_dimension_numbers<[1], [0], [0], [1], [0, 0, 1, 1], [], []>} : vector<16x4xbf16>, vector<4x128xbf16>, vector<16x128xf32> -> vector<16x128xf32>
    %11 = arith.addf %6, %10 : vector<16x128xf32>
    %12 = vector.extract_strided_slice %0 {offsets = [0, 3, 0], sizes = [1, 16, 4], strides = [1, 1, 1]} : vector<1x20x4xbf16> to vector<1x16x4xbf16>
    %13 = vector.shape_cast %12 : vector<1x16x4xbf16> to vector<16x4xbf16>
    %c8 = arith.constant 8 : index
    %c0_7 = arith.constant 0 : index
    %14 = vector.load %arg2[%c8, %c0_7] : memref<24x128xbf16, #tpu.memory_space<vmem>>, vector<4x128xbf16>
    %cst_8 = arith.constant dense<0.000000e+00> : vector<16x128xf32>
    %15 = tpu.matmul %13, %14, %cst_8 {dimension_numbers = #tpu.dot_dimension_numbers<[1], [0], [0], [1], [0, 0, 1, 1], [], []>} : vector<16x4xbf16>, vector<4x128xbf16>, vector<16x128xf32> -> vector<16x128xf32>
    %16 = arith.addf %11, %15 : vector<16x128xf32>
    %17 = vector.extract_strided_slice %0 {offsets = [0, 0, 0], sizes = [1, 16, 4], strides = [1, 1, 1]} : vector<1x20x4xbf16> to vector<1x16x4xbf16>
    %18 = vector.shape_cast %17 : vector<1x16x4xbf16> to vector<16x4xbf16>
    %c12 = arith.constant 12 : index
    %c0_9 = arith.constant 0 : index
    %19 = vector.load %arg2[%c12, %c0_9] : memref<24x128xbf16, #tpu.memory_space<vmem>>, vector<4x128xbf16>
    %cst_10 = arith.constant dense<0.000000e+00> : vector<16x128xf32>
    %20 = tpu.matmul %18, %19, %cst_10 {dimension_numbers = #tpu.dot_dimension_numbers<[1], [0], [0], [1], [0, 0, 1, 1], [], []>} : vector<16x4xbf16>, vector<4x128xbf16>, vector<16x128xf32> -> vector<16x128xf32>
    %21 = arith.addf %16, %20 : vector<16x128xf32>
    %22 = vector.extract_strided_slice %0 {offsets = [0, 2, 0], sizes = [1, 16, 4], strides = [1, 1, 1]} : vector<1x20x4xbf16> to vector<1x16x4xbf16>
    %23 = vector.shape_cast %22 : vector<1x16x4xbf16> to vector<16x4xbf16>
    %c16 = arith.constant 16 : index
    %c0_11 = arith.constant 0 : index
    %24 = vector.load %arg2[%c16, %c0_11] : memref<24x128xbf16, #tpu.memory_space<vmem>>, vector<4x128xbf16>
    %cst_12 = arith.constant dense<0.000000e+00> : vector<16x128xf32>
    %25 = tpu.matmul %23, %24, %cst_12 {dimension_numbers = #tpu.dot_dimension_numbers<[1], [0], [0], [1], [0, 0, 1, 1], [], []>} : vector<16x4xbf16>, vector<4x128xbf16>, vector<16x128xf32> -> vector<16x128xf32>
    %26 = arith.addf %21, %25 : vector<16x128xf32>
    %27 = vector.extract_strided_slice %0 {offsets = [0, 4, 0], sizes = [1, 16, 4], strides = [1, 1, 1]} : vector<1x20x4xbf16> to vector<1x16x4xbf16>
    %28 = vector.shape_cast %27 : vector<1x16x4xbf16> to vector<16x4xbf16>
    %c20 = arith.constant 20 : index
    %c0_13 = arith.constant 0 : index
    %29 = vector.load %arg2[%c20, %c0_13] : memref<24x128xbf16, #tpu.memory_space<vmem>>, vector<4x128xbf16>
    %cst_14 = arith.constant dense<0.000000e+00> : vector<16x128xf32>
    %30 = tpu.matmul %28, %29, %cst_14 {dimension_numbers = #tpu.dot_dimension_numbers<[1], [0], [0], [1], [0, 0, 1, 1], [], []>} : vector<16x4xbf16>, vector<4x128xbf16>, vector<16x128xf32> -> vector<16x128xf32>
    %31 = arith.addf %26, %30 : vector<16x128xf32>
    %c0_15 = arith.constant 0 : index
    %c0_16 = arith.constant 0 : index
    %32 = vector.load %arg3[%c0_15, %c0_16] : memref<1x128xf32, #tpu.memory_space<vmem>>, vector<1x128xf32>
    %33 = vector.broadcast %32 : vector<1x128xf32> to vector<16x128xf32>
    %34 = arith.addf %31, %33 : vector<16x128xf32>
    %cst_17 = arith.constant 0.000000e+00 : f32
    %35 = vector.broadcast %cst_17 : f32 to vector<16x128xf32>
    %36 = arith.maximumf %34, %35 : vector<16x128xf32>
    %37 = vector.shape_cast %36 : vector<16x128xf32> to vector<1x16x128xf32>
    %38 = vector.shape_cast %37 : vector<1x16x128xf32> to vector<1x8x2x128xf32>
    %39 = vector.extract_strided_slice %38 {offsets = [0, 0, 0, 0], sizes = [1, 8, 1, 128], strides = [1, 1, 1, 1]} : vector<1x8x2x128xf32> to vector<1x8x1x128xf32>
    %40 = vector.shape_cast %39 : vector<1x8x1x128xf32> to vector<1x8x128xf32>
    %41 = vector.extract_strided_slice %38 {offsets = [0, 0, 1, 0], sizes = [1, 8, 1, 128], strides = [1, 1, 1, 1]} : vector<1x8x2x128xf32> to vector<1x8x1x128xf32>
    %42 = vector.shape_cast %41 : vector<1x8x1x128xf32> to vector<1x8x128xf32>
    %43 = arith.maximumf %40, %42 : vector<1x8x128xf32>
    %c0_18 = arith.constant 0 : index
    %c0_19 = arith.constant 0 : index
    %c0_20 = arith.constant 0 : index
    %44 = vector.load %arg4[%c0_18, %c0_19, %c0_20] : memref<1x8x128xf32, #tpu.memory_space<vmem>>, vector<1x8x128xf32>
    tpu.vector_store %arg4[%c0_18, %c0_19, %c0_20], %43 {strides = array<i32>} : memref<1x8x128xf32, #tpu.memory_space<vmem>>, vector<1x8x128xf32>,
    return
  }
  func.func @transform_0(%arg0: i32) -> (i32, i32, i32) {
    %c0_i32 = arith.constant 0 : i32
    %c0_i32_0 = arith.constant 0 : i32
    %c0_i32_1 = arith.constant 0 : i32
    return %arg0, %c0_i32, %c0_i32_0 : i32, i32, i32
  }
  func.func @transform_1(%arg0: i32) -> (i32, i32) {
    %c0_i32 = arith.constant 0 : i32
    %c0_i32_0 = arith.constant 0 : i32
    %c0_i32_1 = arith.constant 0 : i32
    return %c0_i32, %c0_i32_0 : i32, i32
  }
  func.func @transform_2(%arg0: i32) -> (i32, i32) {
    %c0_i32 = arith.constant 0 : i32
    %c0_i32_0 = arith.constant 0 : i32
    %c0_i32_1 = arith.constant 0 : i32
    return %c0_i32, %c0_i32_0 : i32, i32
  }
  func.func @transform_3(%arg0: i32) -> (i32, i32, i32) {
    %c0_i32 = arith.constant 0 : i32
    %c0_i32_0 = arith.constant 0 : i32
    %c0_i32_1 = arith.constant 0 : i32
    return %arg0, %c0_i32, %c0_i32_0 : i32, i32, i32
  }
}

</mosaic_0001>

<llo_original>
// kernel: tpu_custom_call.1
$region0: #{tpu_custom_call.1}
  #allocation0 [shape = 'u32[]', space=smem, size = 0x4, offset = 0x4, fixed_abs, tag = 'smem constant byte address 0x4 - core index']
  #allocation1 [shape = 'u32[144,128]{1,0:T(1,128)}', space=vmem, size = 0x12000, scoped, tag = 'internal scratch']
  %s0 = inlined_call_operand.vmem [shape: bf16[2,20,4], index: 0, kind: input, shape index: {}]
  %s1 = inlined_call_operand.vmem [shape: bf16[24,128], index: 1, kind: input, shape index: {}]
  %s2 = inlined_call_operand.vmem [shape: f32[1,128], index: 2, kind: input, shape index: {}]
  %s3 = inlined_call_operand.hbm [shape: f32[2,8,128], index: 3, kind: output, shape index: {}]
  %s4 = sld [smem:[#allocation0]]
  $region45: #{tpu_custom_call.1} parent=0
    _
  %s6 = ssub.s32 1, %s4
  %s7 = scalar_select 0, %s6, %s4
  $region1: #{tpu_custom_call.1} parent=0
    #allocation2 [shape = 'u8[8192]{0}', space=vmem, size = 0x2000, scoped, tag = 'output window, operand 0']
    #allocation3 [shape = 's32[2]{0}', space=sflag, size = 0x8, scoped, tag = 'scoped memory for tpu_custom_call.1']
    %8 = vsyncpa [#allocation3], 0
    %s9 = scalar_lea.sflag [#allocation3], 1
    %10 = vsyncpa %s9, 0
    loop: start=0, step=1, limit=4
    $region2: #{tpu_custom_call.1} parent=1 // loop_pre_header
      _
    $region3: #{tpu_custom_call.1} parent=1 // loop_header
      %s12 = sphi 0, %s16
      %p13 = scmp.ge.s32.totalorder %s12, 4
      %s22 = sphi 0, %s24
      %s25 = sphi 0, %s22
      %s26 = sphi 0, %s25
      %s42 = sphi 0, %s26
      %s46 = sphi 0, %s46
      %s48 = sphi 0, %s46
      %s49 = sphi 0, %s48
      %s63 = sphi 0, %s49
      %s67 = sphi 0, %s67
      %s69 = sphi 0, %s67
      %s70 = sphi 0, %s69
      %s84 = sphi 0, %s70
      %s90 = sphi 0, %s92
      %s93 = sphi 0, %s90
      %s94 = sphi 0, %s93
      %s110 = sphi 0, %s94
    $region4: #{tpu_custom_call.1} parent=1 // loop_header_branch
      %15 = sbr.rel (%p13) target = $region8
    $region5: #{tpu_custom_call.1} parent=1 // loop_body
      %s17 = ssub.s32 %s12, 1
      %s18 = ssub.s32 %s12, 2
      %s19 = sadd.s32 %s12, 1
      %s20 = ssub.s32 %s12, %s19
      %p21 = scmp.eq.s32.totalorder %s20, 0
      %s23 = sadd.s32 %s22, 1
      %s24 = scalar_select %p21, %s22, %s23
      %p27 = pneg %p21
      %p28 = scmp.eq.s32.totalorder %s12, 1
      %p29 = por %p27, %p28
      %p30 = scmp.ne.s32.totalorder %s22, %s25
      %p31 = scmp.eq.s32.totalorder %s12, 0
      %p32 = por %p30, %p31
      %p33 = scmp.ne.s32.totalorder %s22, %s25
      %p34 = scmp.eq.s32.totalorder %s17, 1
      %p35 = por %p33, %p34
      %p36 = scmp.ne.s32.totalorder %s25, %s26
      %p37 = scmp.eq.s32.totalorder %s17, 0
      %p38 = por %p36, %p37
      %p39 = scmp.ne.s32.totalorder %s25, %s26
      %p40 = scmp.eq.s32.totalorder %s18, 1
      %p41 = por %p39, %p40
      %p43 = scmp.ne.s32.totalorder %s26, %s42
      %p44 = scmp.eq.s32.totalorder %s18, 0
      %p45 = por %p43, %p44
      %s47 = sadd.s32 %s46, 1
      %p50 = scmp.eq.s32.totalorder %s12, 1
      %p51 = scmp.ne.s32.totalorder %s46, %s48
      %p52 = scmp.eq.s32.totalorder %s12, 0
      %p53 = por %p51, %p52
      %p54 = scmp.ne.s32.totalorder %s46, %s48
      %p55 = scmp.eq.s32.totalorder %s17, 1
      %p56 = por %p54, %p55
      %p57 = scmp.ne.s32.totalorder %s48, %s49
      %p58 = scmp.eq.s32.totalorder %s17, 0
      %p59 = por %p57, %p58
      %p60 = scmp.ne.s32.totalorder %s48, %s49
      %p61 = scmp.eq.s32.totalorder %s18, 1
      %p62 = por %p60, %p61
      %p64 = scmp.ne.s32.totalorder %s49, %s63
      %p65 = scmp.eq.s32.totalorder %s18, 0
      %p66 = por %p64, %p65
      %s68 = sadd.s32 %s67, 1
      %p71 = scmp.eq.s32.totalorder %s12, 1
      %p72 = scmp.ne.s32.totalorder %s67, %s69
      %p73 = scmp.eq.s32.totalorder %s12, 0
      %p74 = por %p72, %p73
      %p75 = scmp.ne.s32.totalorder %s67, %s69
      %p76 = scmp.eq.s32.totalorder %s17, 1
      %p77 = por %p75, %p76
      %p78 = scmp.ne.s32.totalorder %s69, %s70
      %p79 = scmp.eq.s32.totalorder %s17, 0
      %p80 = por %p78, %p79
      %p81 = scmp.ne.s32.totalorder %s69, %s70
      %p82 = scmp.eq.s32.totalorder %s18, 1
      %p83 = por %p81, %p82
      %p85 = scmp.ne.s32.totalorder %s70, %s84
      %p86 = scmp.eq.s32.totalorder %s18, 0
      %p87 = por %p85, %p86
      %s88 = ssub.s32 %s12, %s19
      %p89 = scmp.eq.s32.totalorder %s88, 0
      %s91 = sadd.s32 %s90, 1
      %s92 = scalar_select %p89, %s90, %s91
      %p95 = pneg %p89
      %p96 = scmp.eq.s32.totalorder %s12, 1
      %p97 = por %p95, %p96
      %p98 = scmp.ne.s32.totalorder %s90, %s93
      %p99 = scmp.eq.s32.totalorder %s12, 0
      %p100 = por %p98, %p99
      %p101 = scmp.ne.s32.totalorder %s90, %s93
      %p102 = scmp.eq.s32.totalorder %s17, 1
      %p103 = por %p101, %p102
      %p104 = scmp.ne.s32.totalorder %s93, %s94
      %p105 = scmp.eq.s32.totalorder %s17, 0
      %p106 = por %p104, %p105
      %p107 = scmp.ne.s32.totalorder %s93, %s94
      %p108 = scmp.eq.s32.totalorder %s18, 1
      %p109 = por %p107, %p108
      %p111 = scmp.ne.s32.totalorder %s94, %s110
      %p112 = scmp.eq.s32.totalorder %s18, 0
      %p113 = por %p111, %p112
      %p114 = scmp.le.s32.totalorder 1, %s12
      %p115 = scmp.lt.s32.totalorder %s12, 3
      %p116 = pnand %p114, %p115
      %p117 = pneg %p116
      // Predicated region
      $region9: #{tpu_custom_call.1} parent=5 // pred_check
        _
      $region10: #{tpu_custom_call.1} parent=5 // pred_check_branch
        %119 = sbr.rel (%p116) target = $region12
      $region11: #{tpu_custom_call.1} parent=5 // pred_region
        %s120 = ssub.s32 %s12, 1
        // Predicated region
        $region13: #{tpu_custom_call.1} parent=11 // pred_check
          %p121 = pneg %p59
        $region14: #{tpu_custom_call.1} parent=11 // pred_check_branch
          %123 = sbr.rel (%p121) target = $region16
        $region15: #{tpu_custom_call.1} parent=11 // pred_region
          _
        $region16: #{tpu_custom_call.1} parent=11 // pred_fallthru
          _
        // Predicated region
        $region17: #{tpu_custom_call.1} parent=11 // pred_check
          %p124 = pneg %p80
        $region18: #{tpu_custom_call.1} parent=11 // pred_check_branch
          %126 = sbr.rel (%p124) target = $region20
        $region19: #{tpu_custom_call.1} parent=11 // pred_region
          _
        $region20: #{tpu_custom_call.1} parent=11 // pred_fallthru
          _
      $region12: #{tpu_custom_call.1} parent=5 // pred_fallthru
        _
      %p127 = scmp.lt.s32.totalorder %s12, 2
      // Predicated region
      $region21: #{tpu_custom_call.1} parent=5 // pred_check
        %p128 = pneg %p127
      $region22: #{tpu_custom_call.1} parent=5 // pred_check_branch
        %130 = sbr.rel (%p128) target = $region24
      $region23: #{tpu_custom_call.1} parent=5 // pred_region
        // Predicated region
        $region25: #{tpu_custom_call.1} parent=23 // pred_check
          %p131 = pneg %p32
        $region26: #{tpu_custom_call.1} parent=23 // pred_check_branch
          %133 = sbr.rel (%p131) target = $region28
        $region27: #{tpu_custom_call.1} parent=23 // pred_region
          %p134 = scmp.lt.s32.totalorder %s12, 1
          %s135 = scalar_select %p134, %s12, 1
          %s136 = smul.addr %s135, 3
          %s137 = smul.addr %s136, 4
          %s138 = scalar_lea.vmem %s0, %s137
        $region28: #{tpu_custom_call.1} parent=23 // pred_fallthru
          _
      $region24: #{tpu_custom_call.1} parent=5 // pred_fallthru
        _
      %p139 = scmp.le.s32.totalorder 1, %s12
      %p140 = scmp.lt.s32.totalorder %s12, 3
      %p141 = pnand %p139, %p140
      %p142 = pneg %p141
      // Predicated region
      $region29: #{tpu_custom_call.1} parent=5 // pred_check
        _
      $region30: #{tpu_custom_call.1} parent=5 // pred_check_branch
        %144 = sbr.rel (%p141) target = $region32
      $region31: #{tpu_custom_call.1} parent=5 // pred_region
        %s145 = ssub.s32 %s12, 1
        %p146 = scmp.lt.s32.totalorder %s17, 1
        %s147 = scalar_select %p146, %s17, 1
        %s148 = smul.addr %s147, 3
        %s149 = smul.addr %s148, 4
        %s150 = scalar_lea.vmem %s0, %s149
        %p151 = pneg %p38
        %p152 = pneg %p35
        %p153 = pneg %p59
        %p154 = pneg %p56
        %p155 = pneg %p80
        %p156 = pneg %p77
        %p157 = pneg %p106
        %p158 = pneg %p103
        %s159 = sand.u32 %s93, 1
        %s160 = scalar_lea.sflag [#allocation3], %s159
        %s161 = sand.u32 %s93, 1
        %s162 = smul.addr %s161, 8
        %s163 = scalar_lea.vmem [#allocation2], %s162
        %p164 = scmp.lt.s32.totalorder %s17, 1
        %s165 = scalar_select %p164, %s17, 1
        %s166 = smul.addr %s165, 3
        %s167 = smul.addr %s166, 4
        %s168 = scalar_lea.vmem %s0, %s167
        %v170 = vld [vmem:[%s168] sm:$0xf]
        %v171 = vld [vmem:[%s168 + $0x4] sm:$0xf]
        %v172 = vld [vmem:[%s168 + $0x8] sm:$0x3]
        %v173 = vld [vmem:[%s1] sm:$0x3]
        %v174 = vld [vmem:[%s1] sm:$0xc]
        %v178 = vunpack.c.l.b16 %v170
        %v179 = vunpack.c.l.b16 %v171
        %v180 = vunpack.c.l.b16 %v172
        %v181 = vpack.c.b16 %v179, %v178
        %v182 = vpack.c.b16 %v180, %v180
        %vm183 = vcmask 1046528
        %v184 = vrot.slane %v181, 1
        %v185 = vrot.slane %v182, 1
        %v186 = vsel %vm183, %v184, %v185
        %v188 = vunpack.c.l.b16 %v174
        %v189 = vpack.c.b16 %v188, %v188
        %v190 = vrot.slane %v189, 2
        %vm191 = vcmask 31744
        %v193 = vsel %vm191, %v186, 0
        %vm195 = vcmask 1041408
        %v197 = vsel %vm195, %v190, 0
        %199 = vmatprep.subr.bf16.mxu0 0
        %200 = vmatpush1.bf16.msra.mxu0 0
        %201 = vmatprep.subr.bf16.mxu0 0
        %202 = vmatpush1.bf16.msra.mxu0 0
        %203 = vmatprep.subr.bf16.mxu0 0
        %204 = vmatpush1.bf16.msra.mxu0 0
        %205 = vmatprep.subr.bf16.mxu0 0
        %206 = vmatpush1.bf16.msra.mxu0 0
        %207 = vmatprep.subr.bf16.mxu0 0
        %208 = vmatpush1.bf16.msra.mxu0 0
        %209 = vmatprep.subr.bf16.mxu0 0
        %210 = vmatpush1.bf16.msra.mxu0 0
        %211 = vmatprep.subr.bf16.mxu0 0
        %212 = vmatpush1.bf16.msra.mxu0 0
        %213 = vmatprep.subr.bf16.mxu0 0
        %214 = vmatpush1.bf16.msra.mxu0 %v197
        %215 = vmatprep.subr.bf16.mxu0 0
        %216 = vmatpush2.bf16.msra.mxu0 0
        %217 = vmatprep.subr.bf16.mxu0 0
        %218 = vmatpush2.bf16.msra.mxu0 0
        %219 = vmatprep.subr.bf16.mxu0 0
        %220 = vmatpush2.bf16.msra.mxu0 0
        %221 = vmatprep.subr.bf16.mxu0 0
        %222 = vmatpush2.bf16.msra.mxu0 0
        %223 = vmatprep.subr.bf16.mxu0 0
        %224 = vmatpush2.bf16.msra.mxu0 0
        %225 = vmatprep.subr.bf16.mxu0 0
        %226 = vmatpush2.bf16.msra.mxu0 0
        %227 = vmatprep.subr.bf16.mxu0 0
        %228 = vmatpush2.bf16.msra.mxu0 0
        %229 = vmatprep.subr.bf16.mxu0 0
        %230 = vmatpush2.bf16.msra.mxu0 0
        %231 = vmatprep.mubr.bf16.mxu0 0
        %232 = vmatmul.mubr.bf16.gmra.mxu0 %v193
        %v233 = vpop.f32.mrf.mxu0
        %v234 = vadd.f32 0.0, %v233
        %v235 = vpop.f32.mrf.mxu0
        %v236 = vpop.f32.mrf.mxu0
        %v237 = vadd.f32 0.0, %v236
        %v238 = vpop.f32.mrf.mxu0
        %239 = vdwg.mxu0
        %vm240 = vsmask.f32 7424
        %v242 = vshrl.u32 %v181, 16
        %v244 = vshll.u32 %v181, 16
        %v246 = vrot.slane %v244, 1
        %v247 = vor.u32 %v242, %v246
        %v249 = vshll.u32 %v182, 16
        %v251 = vrot.slane %v249, 1
        %v252 = vsel %vm240, %v247, %v251
        %v254 = vsel %vm191, %v252, 0
        %v257 = vsel %vm195, %v173, 0
        %259 = vmatprep.subr.bf16.mxu0 0
        %260 = vmatpush1.bf16.msra.mxu0 0
        %261 = vmatprep.subr.bf16.mxu0 0
        %262 = vmatpush1.bf16.msra.mxu0 0
        %263 = vmatprep.subr.bf16.mxu0 0
        %264 = vmatpush1.bf16.msra.mxu0 0
        %265 = vmatprep.subr.bf16.mxu0 0
        %266 = vmatpush1.bf16.msra.mxu0 0
        %267 = vmatprep.subr.bf16.mxu0 0
        %268 = vmatpush1.bf16.msra.mxu0 0
        %269 = vmatprep.subr.bf16.mxu0 0
        %270 = vmatpush1.bf16.msra.mxu0 0
        %271 = vmatprep.subr.bf16.mxu0 0
        %272 = vmatpush1.bf16.msra.mxu0 0
        %273 = vmatprep.subr.bf16.mxu0 0
        %274 = vmatpush1.bf16.msra.mxu0 %v257
        %275 = vmatprep.subr.bf16.mxu0 0
        %276 = vmatpush2.bf16.msra.mxu0 0
        %277 = vmatprep.subr.bf16.mxu0 0
        %278 = vmatpush2.bf16.msra.mxu0 0
        %279 = vmatprep.subr.bf16.mxu0 0
        %280 = vmatpush2.bf16.msra.mxu0 0
        %281 = vmatprep.subr.bf16.mxu0 0
        %282 = vmatpush2.bf16.msra.mxu0 0
        %283 = vmatprep.subr.bf16.mxu0 0
        %284 = vmatpush2.bf16.msra.mxu0 0
        %285 = vmatprep.subr.bf16.mxu0 0
        %286 = vmatpush2.bf16.msra.mxu0 0
        %287 = vmatprep.subr.bf16.mxu0 0
        %288 = vmatpush2.bf16.msra.mxu0 0
        %289 = vmatprep.subr.bf16.mxu0 0
        %290 = vmatpush2.bf16.msra.mxu0 0
        %291 = vmatprep.mubr.bf16.mxu0 0
        %292 = vmatmul.mubr.bf16.gmra.mxu0 %v254
        %v293 = vpop.f32.mrf.mxu0
        %v294 = vadd.f32 %v234, %v293
        %v295 = vpop.f32.mrf.mxu0
        %v296 = vpop.f32.mrf.mxu0
        %v297 = vadd.f32 %v237, %v296
        %v298 = vpop.f32.mrf.mxu0
        %299 = vdwg.mxu0
        %v300 = vld [vmem:[%s1 + $0x4] sm:$0x3]
        %vm301 = vsmask.f32 6400
        %v302 = vrot.slane %v242, 1
        %v303 = vrot.slane %v244, 2
        %v304 = vor.u32 %v302, %v303
        %v305 = vshrl.u32 %v182, 16
        %v307 = vrot.slane %v305, 1
        %v308 = vrot.slane %v249, 2
        %v309 = vor.u32 %v307, %v308
        %v310 = vsel %vm301, %v304, %v309
        %v312 = vsel %vm191, %v310, 0
        %v315 = vsel %vm195, %v300, 0
        %317 = vmatprep.subr.bf16.mxu0 0
        %318 = vmatpush1.bf16.msra.mxu0 0
        %319 = vmatprep.subr.bf16.mxu0 0
        %320 = vmatpush1.bf16.msra.mxu0 0
        %321 = vmatprep.subr.bf16.mxu0 0
        %322 = vmatpush1.bf16.msra.mxu0 0
        %323 = vmatprep.subr.bf16.mxu0 0
        %324 = vmatpush1.bf16.msra.mxu0 0
        %325 = vmatprep.subr.bf16.mxu0 0
        %326 = vmatpush1.bf16.msra.mxu0 0
        %327 = vmatprep.subr.bf16.mxu0 0
        %328 = vmatpush1.bf16.msra.mxu0 0
        %329 = vmatprep.subr.bf16.mxu0 0
        %330 = vmatpush1.bf16.msra.mxu0 0
        %331 = vmatprep.subr.bf16.mxu0 0
        %332 = vmatpush1.bf16.msra.mxu0 %v315
        %333 = vmatprep.subr.bf16.mxu0 0
        %334 = vmatpush2.bf16.msra.mxu0 0
        %335 = vmatprep.subr.bf16.mxu0 0
        %336 = vmatpush2.bf16.msra.mxu0 0
        %337 = vmatprep.subr.bf16.mxu0 0
        %338 = vmatpush2.bf16.msra.mxu0 0
        %339 = vmatprep.subr.bf16.mxu0 0
        %340 = vmatpush2.bf16.msra.mxu0 0
        %341 = vmatprep.subr.bf16.mxu0 0
        %342 = vmatpush2.bf16.msra.mxu0 0
        %343 = vmatprep.subr.bf16.mxu0 0
        %344 = vmatpush2.bf16.msra.mxu0 0
        %345 = vmatprep.subr.bf16.mxu0 0
        %346 = vmatpush2.bf16.msra.mxu0 0
        %347 = vmatprep.subr.bf16.mxu0 0
        %348 = vmatpush2.bf16.msra.mxu0 0
        %349 = vmatprep.mubr.bf16.mxu0 0
        %350 = vmatmul.mubr.bf16.gmra.mxu0 %v312
        %v351 = vpop.f32.mrf.mxu0
        %v352 = vadd.f32 0.0, %v351
        %v353 = vpop.f32.mrf.mxu0
        %v354 = vpop.f32.mrf.mxu0
        %v355 = vadd.f32 0.0, %v354
        %v356 = vpop.f32.mrf.mxu0
        %357 = vdwg.mxu0
        %v358 = vadd.f32 %v294, %v352
        %v359 = vadd.f32 %v297, %v355
        %v360 = vld [vmem:[%s1 + $0x4] sm:$0xc]
        %v362 = vunpack.c.l.b16 %v360
        %v363 = vpack.c.b16 %v362, %v362
        %v364 = vrot.slane %v363, 2
        %v365 = vsel %vm191, %v181, 0
        %v368 = vsel %vm195, %v364, 0
        %370 = vmatprep.subr.bf16.mxu0 0
        %371 = vmatpush1.bf16.msra.mxu0 0
        %372 = vmatprep.subr.bf16.mxu0 0
        %373 = vmatpush1.bf16.msra.mxu0 0
        %374 = vmatprep.subr.bf16.mxu0 0
        %375 = vmatpush1.bf16.msra.mxu0 0
        %376 = vmatprep.subr.bf16.mxu0 0
        %377 = vmatpush1.bf16.msra.mxu0 0
        %378 = vmatprep.subr.bf16.mxu0 0
        %379 = vmatpush1.bf16.msra.mxu0 0
        %380 = vmatprep.subr.bf16.mxu0 0
        %381 = vmatpush1.bf16.msra.mxu0 0
        %382 = vmatprep.subr.bf16.mxu0 0
        %383 = vmatpush1.bf16.msra.mxu0 0
        %384 = vmatprep.subr.bf16.mxu0 0
        %385 = vmatpush1.bf16.msra.mxu0 %v368
        %386 = vmatprep.subr.bf16.mxu0 0
        %387 = vmatpush2.bf16.msra.mxu0 0
        %388 = vmatprep.subr.bf16.mxu0 0
        %389 = vmatpush2.bf16.msra.mxu0 0
        %390 = vmatprep.subr.bf16.mxu0 0
        %391 = vmatpush2.bf16.msra.mxu0 0
        %392 = vmatprep.subr.bf16.mxu0 0
        %393 = vmatpush2.bf16.msra.mxu0 0
        %394 = vmatprep.subr.bf16.mxu0 0
        %395 = vmatpush2.bf16.msra.mxu0 0
        %396 = vmatprep.subr.bf16.mxu0 0
        %397 = vmatpush2.bf16.msra.mxu0 0
        %398 = vmatprep.subr.bf16.mxu0 0
        %399 = vmatpush2.bf16.msra.mxu0 0
        %400 = vmatprep.subr.bf16.mxu0 0
        %401 = vmatpush2.bf16.msra.mxu0 0
        %402 = vmatprep.mubr.bf16.mxu0 0
        %403 = vmatmul.mubr.bf16.gmra.mxu0 %v365
        %v404 = vpop.f32.mrf.mxu0
        %v405 = vadd.f32 0.0, %v404
        %v406 = vpop.f32.mrf.mxu0
        %v407 = vpop.f32.mrf.mxu0
        %v408 = vadd.f32 0.0, %v407
        %v409 = vpop.f32.mrf.mxu0
        %410 = vdwg.mxu0
        %v411 = vadd.f32 %v358, %v405
        %v412 = vadd.f32 %v359, %v408
        %v413 = vld [vmem:[%s1 + $0x8] sm:$0x3]
        %v415 = vsel %vm195, %v413, 0
        %417 = vmatprep.subr.bf16.mxu0 0
        %418 = vmatpush1.bf16.msra.mxu0 0
        %419 = vmatprep.subr.bf16.mxu0 0
        %420 = vmatpush1.bf16.msra.mxu0 0
        %421 = vmatprep.subr.bf16.mxu0 0
        %422 = vmatpush1.bf16.msra.mxu0 0
        %423 = vmatprep.subr.bf16.mxu0 0
        %424 = vmatpush1.bf16.msra.mxu0 0
        %425 = vmatprep.subr.bf16.mxu0 0
        %426 = vmatpush1.bf16.msra.mxu0 0
        %427 = vmatprep.subr.bf16.mxu0 0
        %428 = vmatpush1.bf16.msra.mxu0 0
        %429 = vmatprep.subr.bf16.mxu0 0
        %430 = vmatpush1.bf16.msra.mxu0 0
        %431 = vmatprep.subr.bf16.mxu0 0
        %432 = vmatpush1.bf16.msra.mxu0 %v415
        %433 = vmatprep.subr.bf16.mxu0 0
        %434 = vmatpush2.bf16.msra.mxu0 0
        %435 = vmatprep.subr.bf16.mxu0 0
        %436 = vmatpush2.bf16.msra.mxu0 0
        %437 = vmatprep.subr.bf16.mxu0 0
        %438 = vmatpush2.bf16.msra.mxu0 0
        %439 = vmatprep.subr.bf16.mxu0 0
        %440 = vmatpush2.bf16.msra.mxu0 0
        %441 = vmatprep.subr.bf16.mxu0 0
        %442 = vmatpush2.bf16.msra.mxu0 0
        %443 = vmatprep.subr.bf16.mxu0 0
        %444 = vmatpush2.bf16.msra.mxu0 0
        %445 = vmatprep.subr.bf16.mxu0 0
        %446 = vmatpush2.bf16.msra.mxu0 0
        %447 = vmatprep.subr.bf16.mxu0 0
        %448 = vmatpush2.bf16.msra.mxu0 0
        %449 = vmatprep.mubr.bf16.mxu0 0
        %450 = vmatmul.mubr.bf16.gmra.mxu0 %v193
        %v451 = vpop.f32.mrf.mxu0
        %v452 = vadd.f32 0.0, %v451
        %v453 = vpop.f32.mrf.mxu0
        %v454 = vpop.f32.mrf.mxu0
        %v455 = vadd.f32 0.0, %v454
        %v456 = vpop.f32.mrf.mxu0
        %457 = vdwg.mxu0
        %v458 = vadd.f32 %v411, %v452
        %v459 = vadd.f32 %v412, %v455
        %v460 = vld [vmem:[%s1 + $0x8] sm:$0xc]
        %vm461 = vcmask 1045504
        %v462 = vrot.slane %v181, 2
        %v463 = vrot.slane %v182, 2
        %v464 = vsel %vm461, %v462, %v463
        %v466 = vunpack.c.l.b16 %v460
        %v467 = vpack.c.b16 %v466, %v466
        %v468 = vrot.slane %v467, 2
        %v470 = vsel %vm191, %v464, 0
        %v473 = vsel %vm195, %v468, 0
        %475 = vmatprep.subr.bf16.mxu0 0
        %476 = vmatpush1.bf16.msra.mxu0 0
        %477 = vmatprep.subr.bf16.mxu0 0
        %478 = vmatpush1.bf16.msra.mxu0 0
        %479 = vmatprep.subr.bf16.mxu0 0
        %480 = vmatpush1.bf16.msra.mxu0 0
        %481 = vmatprep.subr.bf16.mxu0 0
        %482 = vmatpush1.bf16.msra.mxu0 0
        %483 = vmatprep.subr.bf16.mxu0 0
        %484 = vmatpush1.bf16.msra.mxu0 0
        %485 = vmatprep.subr.bf16.mxu0 0
        %486 = vmatpush1.bf16.msra.mxu0 0
        %487 = vmatprep.subr.bf16.mxu0 0
        %488 = vmatpush1.bf16.msra.mxu0 0
        %489 = vmatprep.subr.bf16.mxu0 0
        %490 = vmatpush1.bf16.msra.mxu0 %v473
        %491 = vmatprep.subr.bf16.mxu0 0
        %492 = vmatpush2.bf16.msra.mxu0 0
        %493 = vmatprep.subr.bf16.mxu0 0
        %494 = vmatpush2.bf16.msra.mxu0 0
        %495 = vmatprep.subr.bf16.mxu0 0
        %496 = vmatpush2.bf16.msra.mxu0 0
        %497 = vmatprep.subr.bf16.mxu0 0
        %498 = vmatpush2.bf16.msra.mxu0 0
        %499 = vmatprep.subr.bf16.mxu0 0
        %500 = vmatpush2.bf16.msra.mxu0 0
        %501 = vmatprep.subr.bf16.mxu0 0
        %502 = vmatpush2.bf16.msra.mxu0 0
        %503 = vmatprep.subr.bf16.mxu0 0
        %504 = vmatpush2.bf16.msra.mxu0 0
        %505 = vmatprep.subr.bf16.mxu0 0
        %506 = vmatpush2.bf16.msra.mxu0 0
        %507 = vmatprep.mubr.bf16.mxu0 0
        %508 = vmatmul.mubr.bf16.gmra.mxu0 %v470
        %v509 = vpop.f32.mrf.mxu0
        %v510 = vadd.f32 0.0, %v509
        %v511 = vpop.f32.mrf.mxu0
        %v512 = vpop.f32.mrf.mxu0
        %v513 = vadd.f32 0.0, %v512
        %v514 = vpop.f32.mrf.mxu0
        %515 = vdwg.mxu0
        %v516 = vadd.f32 %v458, %v510
        %v517 = vadd.f32 %v459, %v513
        %v518 = vld [vmem:[%s2] sm:$0x1]
        %v520 = vlaneseq
        %v521 = vshrl.u32 %v520, 7
        %v522 = vsub.s32 0, %v521
        %v523 = vrot.slane %v518, %v522
        %v525 = vadd.f32 %v516, %v523
        %v526 = vadd.f32 %v517, %v523
        %v527 = vmax.f32 %v525, 0.0
        %v528 = vmax.f32 %v526, 0.0
        %v531 = vcombine.high %v527, %v527
        %v533 = vunpack.c.l.s4 1983009808
        %v534 = vunpack.c.0.s8 %v533
        %v535 = vlaneseq
        %v536 = vshrl.u32 %v535, 7
        %v537 = vsub.s32 %v534, %v536
        %v538 = vrot.slane %v527, %v537
        %v540 = vunpack.c.l.s4 1983009808
        %v541 = vunpack.c.0.s8 %v540
        %v542 = vlaneseq
        %v543 = vshrl.u32 %v542, 7
        %v544 = vsub.s32 %v541, %v543
        %v545 = vrot.slane %v531, %v544
        %v546 = vcombine.high %v538, %v538
        %v547 = vcombine.high %v545, %v545
        %v548 = vcombine.high %v528, %v528
        %v550 = vunpack.c.l.s4 1983009808
        %v551 = vunpack.c.0.s8 %v550
        %v552 = vlaneseq
        %v553 = vshrl.u32 %v552, 7
        %v554 = vsub.s32 %v551, %v553
        %v555 = vrot.slane %v528, %v554
        %v557 = vunpack.c.l.s4 1983009808
        %v558 = vunpack.c.0.s8 %v557
        %v559 = vlaneseq
        %v560 = vshrl.u32 %v559, 7
        %v561 = vsub.s32 %v558, %v560
        %v562 = vrot.slane %v548, %v561
        %v563 = vcombine.high %v555, %v555
        %v564 = vcombine.high %v562, %v562
        %v573 = vrot.slane %v538, 7
        %v574 = vrot.slane %v573, 2
        %v575 = vrot.slane %v546, 7
        %v576 = vrot.slane %v575, 2
        %v577 = vrot.slane %v545, 7
        %v578 = vrot.slane %v577, 2
        %v579 = vrot.slane %v547, 7
        %v580 = vrot.slane %v579, 2
        %v581 = vrot.slane %v555, 7
        %v582 = vrot.slane %v581, 2
        %v583 = vrot.slane %v563, 7
        %v584 = vrot.slane %v583, 2
        %v585 = vrot.slane %v562, 7
        %v586 = vrot.slane %v585, 2
        %v587 = vrot.slane %v564, 7
        %v588 = vrot.slane %v587, 2
        %v597 = vmax.f32 %v538, %v574
        %v598 = vmax.f32 %v546, %v576
        %v599 = vmax.f32 %v545, %v578
        %v600 = vmax.f32 %v547, %v580
        %v601 = vmax.f32 %v555, %v582
        %v602 = vmax.f32 %v563, %v584
        %v603 = vmax.f32 %v562, %v586
        %v604 = vmax.f32 %v564, %v588
        %v613 = vlaneseq
        %v614 = vshrl.u32 %v613, 7
        %v615 = vsub.s32 0, %v614
        %v616 = vrot.slane %v597, %v615
        %v617 = vlaneseq
        %v618 = vshrl.u32 %v617, 7
        %v619 = vsub.s32 0, %v618
        %v620 = vrot.slane %v598, %v619
        %v621 = vlaneseq
        %v622 = vshrl.u32 %v621, 7
        %v623 = vsub.s32 0, %v622
        %v624 = vrot.slane %v599, %v623
        %v625 = vlaneseq
        %v626 = vshrl.u32 %v625, 7
        %v627 = vsub.s32 0, %v626
        %v628 = vrot.slane %v600, %v627
        %v629 = vlaneseq
        %v630 = vshrl.u32 %v629, 7
        %v631 = vsub.s32 0, %v630
        %v632 = vrot.slane %v601, %v631
        %v633 = vlaneseq
        %v634 = vshrl.u32 %v633, 7
        %v635 = vsub.s32 0, %v634
        %v636 = vrot.slane %v602, %v635
        %v637 = vlaneseq
        %v638 = vshrl.u32 %v637, 7
        %v639 = vsub.s32 0, %v638
        %v640 = vrot.slane %v603, %v639
        %v641 = vlaneseq
        %v642 = vshrl.u32 %v641, 7
        %v643 = vsub.s32 0, %v642
        %v644 = vrot.slane %v604, %v643
        %vm645 = vcmask 1041409
        %v646 = vsel %vm645, %v620, %v616
        %vm647 = vcmask 1042434
        %v648 = vsel %vm647, %v624, %v646
        %vm649 = vcmask 1043459
        %v650 = vsel %vm649, %v628, %v648
        %vm651 = vcmask 1044484
        %v652 = vsel %vm651, %v632, %v650
        %vm653 = vcmask 1045509
        %v654 = vsel %vm653, %v636, %v652
        %vm655 = vcmask 1046534
        %v656 = vsel %vm655, %v640, %v654
        %vm657 = vcmask 1047559
        %v658 = vsel %vm657, %v644, %v656
        %660 = vst [vmem:[%s163] sm:$0xff] %v658
        %s661 = sand.u32 %s93, 1
        %s662 = scalar_lea.sflag [#allocation3], %s661
        %s663 = sand.u32 %s93, 1
        %s664 = smul.addr %s663, 8
        %s665 = scalar_lea.vmem [#allocation2], %s664
        // Predicated region
        $region33: #{tpu_custom_call.1} parent=31 // pred_check
          %p666 = pneg %p103
        $region34: #{tpu_custom_call.1} parent=31 // pred_check_branch
          %668 = sbr.rel (%p666) target = $region36
        $region35: #{tpu_custom_call.1} parent=31 // pred_region
          %s670 = ssub.s32 128, 128
          %671 = vsyncadd %s662, %s670
          %s672 = smul.addr %s17, 128
          %s673 = scalar_lea.hbm %s3, %s672
          %s675 = sshll.u32 %s665, 4
          %s676 = int_to_ptr.vmem [resolvable:$true] %s675
          %678 = dma.vmem_to_hbm [thread:$0]  %s676, 128, %s673, %s662
        $region36: #{tpu_custom_call.1} parent=31 // pred_fallthru
          _
      $region32: #{tpu_custom_call.1} parent=5 // pred_fallthru
        _
      %p679 = scmp.le.s32.totalorder 2, %s12
      // Predicated region
      $region37: #{tpu_custom_call.1} parent=5 // pred_check
        %p680 = pneg %p679
      $region38: #{tpu_custom_call.1} parent=5 // pred_check_branch
        %682 = sbr.rel (%p680) target = $region40
      $region39: #{tpu_custom_call.1} parent=5 // pred_region
        %s683 = ssub.s32 %s12, 2
        // Predicated region
        $region41: #{tpu_custom_call.1} parent=39 // pred_check
          %p684 = pneg %p109
        $region42: #{tpu_custom_call.1} parent=39 // pred_check_branch
          %686 = sbr.rel (%p684) target = $region44
        $region43: #{tpu_custom_call.1} parent=39 // pred_region
          %s687 = sand.u32 %s94, 1
          %s688 = scalar_lea.sflag [#allocation3], %s687
          %s689 = sand.u32 %s94, 1
          %s690 = smul.addr %s689, 8
          %s691 = scalar_lea.vmem [#allocation2], %s690
          %692 = dma.done %s688, 128
        $region44: #{tpu_custom_call.1} parent=39 // pred_fallthru
          _
      $region40: #{tpu_custom_call.1} parent=5 // pred_fallthru
        _
    $region6: #{tpu_custom_call.1} parent=1 // loop_footer
      %s16 = sadd.s32 1, %s12
    $region7: #{tpu_custom_call.1} parent=1 // loop_footer_branch
      %11 = sbr.rel target = $region3
    $region8: #{tpu_custom_call.1} parent=1 // loop_exit
      _
    %693 = vsyncpa [#allocation3], 1
    %s694 = scalar_lea.sflag [#allocation3], 1
    %695 = vsyncpa %s694, 1

</llo_original>
